<compile_context>
chip_gen: v6e
topology: v6e:2x2x1
jax: 0.10.0
libtpu: 0.0.40
codegen_flags: <defaults>
</compile_context>

<pallas_src>
import numpy as np
import jax
import jax.numpy as jnp
from jax.experimental import pallas as pl
from jax.experimental.pallas import tpu as pltpu


def _flat_pool_matrix_np(h_in: int, w_in: int, f: int) -> np.ndarray:
    """Direct flat f x f / stride-f average-pool matrix P^T (host constant).

    Returns P^T of shape (h_in*w_in, h_out*w_out) such that
      flat_pooled = flat_x @ P^T
    implements AvgPool2d(f, f, 0) on a row-major-flattened (h_in, w_in) plane.
    """
    h_out, w_out = h_in // f, w_in // f
    in_idx = np.arange(h_in * w_in)
    ih, iw = in_idx // w_in, in_idx % w_in
    out_col = (ih // f) * w_out + (iw // f)
    p = np.zeros((h_in * w_in, h_out * w_out), dtype=np.float32)
    p[in_idx, out_col] = 1.0 / (f * f)
    return p


def _encoder_kernel(x_ref, pall_ref, o_ref):
    # x_ref: (TB, H*W) lane-dense slab of TB independent (n, c) planes.
    # One large-M MXU matmul produces all three pooling levels at once.
    o_ref[...] = jnp.dot(x_ref[...], pall_ref[...],
                         preferred_element_type=jnp.float32)


def encoder_forward(x: jnp.ndarray):
    """x: (N, C, H, W) float32 -> (encoded, x1, x2) matching the PyTorch module."""
    N, C, H, W = x.shape
    assert H % 8 == 0 and W % 8 == 0, "need H, W divisible by 8 for three 2x2 pools"
    NC = N * C
    HW = H * W
    H1, W1 = H // 2, W // 2
    H2, W2 = H // 4, W // 4
    H3, W3 = H // 8, W // 8
    HW1, HW2, HW3 = H1 * W1, H2 * W2, H3 * W3
    HW_OUT = HW1 + HW2 + HW3

    # Free reshape: NCHW is contiguous, (NC, H*W) is the same buffer.
    x_flat = x.reshape(NC, HW).astype(jnp.float32)

    # Host-built (numpy) fused pooling matrix: columns [2x2 | 4x4 | 8x8].
    p_all_np = np.concatenate(
        [_flat_pool_matrix_np(H, W, 2),
         _flat_pool_matrix_np(H, W, 4),
         _flat_pool_matrix_np(H, W, 8)], axis=1)          # (HW, HW_OUT)
    p_all = jnp.asarray(p_all_np)

    # --- Tile-size selection ------------------------------------------------
    # ~2 MiB f32 input slab per grid step, sublane-aligned.
    target_tb = max(8, ((2 << 20) // (HW * 4)) // 8 * 8)
    if NC <= target_tb:
        if NC >= 32:
            # Small-ish problem: still split into ~4 blocks for the v7x megacore.
            tb = max(8, ((NC // 4) // 8) * 8)
        else:
            tb = NC                    # single full block (block == full dim ok)
    else:
        tb = target_tb
        # Cap so the grid keeps >= 4 blocks (2 TCs x 2+ steps each on v7x).
        tb = min(tb, max(8, ((NC // 4) // 8) * 8))
    grid = (pl.cdiv(NC, tb),)

    # --- VMEM budget guard --------------------------------------------------
    # Double-buffered input/output slabs + the grid-resident pool matrix.
    vmem_needed = 4 * (2 * tb * HW + 2 * tb * HW_OUT + 2 * HW * HW_OUT)
    if vmem_needed > (48 << 20):
        # TODO(synk): for large H,W switch to separable (W-then-H) pooling or a
        # K-tiled matmul instead of the dense O((HW)^2) flat-pool matrix.
        raise ValueError(
            f"dense pool matrix needs ~{vmem_needed >> 20} MiB VMEM; too large "
            f"for v7x (64 MiB). Use separable pooling for H,W={H},{W}.")
    vmem_limit = int(min(max(2 * vmem_needed, 32 << 20), 56 << 20))

    flops = 2 * NC * HW * HW_OUT
    bytes_accessed = 4 * (NC * (HW + HW_OUT) + HW * HW_OUT)

    out = pl.pallas_call(
        _encoder_kernel,
        out_shape=jax.ShapeDtypeStruct((NC, HW_OUT), jnp.float32),
        grid=grid,
        in_specs=[
            pl.BlockSpec((tb, HW), lambda i: (i, 0)),
            pl.BlockSpec((HW, HW_OUT), lambda i: (0, 0)),   # grid-resident constant
        ],
        out_specs=pl.BlockSpec((tb, HW_OUT), lambda i: (i, 0)),
        compiler_params=pltpu.CompilerParams(
            dimension_semantics=("parallel",),
            vmem_limit_bytes=vmem_limit),
        cost_estimate=pl.CostEstimate(
            flops=flops, transcendentals=0, bytes_accessed=bytes_accessed),
    )(x_flat, p_all)

    # Free slices / reshapes back to the module's output views.
    x1 = out[:, :HW1].reshape(N, C, H1, W1)
    x2 = out[:, HW1:HW1 + HW2].reshape(N, C, H2, W2)
    # PyTorch: x3.view(-1, H3*W3, 1, 1) => batch dim becomes N*C
    encoded = out[:, HW1 + HW2:].reshape(NC, HW3, 1, 1)
    return encoded, x1, x2


def _avgpool2x2_ref(x):
    N, C, H, W = x.shape
    return x.reshape(N, C, H // 2, 2, W // 2, 2).mean(axis=(3, 5))


if __name__ == "__main__":
    key = jax.random.PRNGKey(0)
    N, C, H, W = 2, 4, 16, 16
    x = jax.random.normal(key, (N, C, H, W), dtype=jnp.float32)

    encoded, x1, x2 = jax.block_until_ready(encoder_forward(x))

    # Reference check (plain JAX)
    r1 = _avgpool2x2_ref(x)
    r2 = _avgpool2x2_ref(r1)
    r3 = _avgpool2x2_ref(r2)
    r_enc = r3.reshape(-1, r3.shape[2] * r3.shape[3], 1, 1)

    assert encoded.shape == (N * C, (H // 8) * (W // 8), 1, 1)
    assert x1.shape == (N, C, H // 2, W // 2)
    assert x2.shape == (N, C, H // 4, W // 4)
    assert jnp.allclose(x1, r1, atol=1e-5)
    assert jnp.allclose(x2, r2, atol=1e-5)
    assert jnp.allclose(encoded, r_enc, atol=1e-5)

    print("KERNEL_OK")
</pallas_src>

<mosaic_0001>
module attributes {stable_mosaic.version = 11 : i64} {
  func.func @_encoder_kernel(%arg0: i32, %arg1: memref<8x256xf32, #tpu.memory_space<vmem>>, %arg2: memref<256x84xf32, #tpu.memory_space<vmem>>, %arg3: memref<8x84xf32, #tpu.memory_space<vmem>>) attributes {dimension_semantics = [#tpu.dimension_semantics<parallel>], iteration_bounds = array<i64: 1>, scalar_prefetch = 0 : i64, scratch_operands = 0 : i64, tpu.core_type = #tpu.core_type<tc>, window_params = [{transform_indices = @transform_0, window_bounds = array<i64: 8, 256>}, {pipeline_mode = #tpu.pipeline_mode<synchronous>, transform_indices = @transform_1, window_bounds = array<i64: 256, 84>}, {transform_indices = @transform_2, window_bounds = array<i64: 8, 84>}]} {
    %c0 = arith.constant 0 : index
    %c0_0 = arith.constant 0 : index
    %0 = vector.load %arg1[%c0, %c0_0] : memref<8x256xf32, #tpu.memory_space<vmem>>, vector<8x256xf32>
    %c0_1 = arith.constant 0 : index
    %c0_2 = arith.constant 0 : index
    %1 = vector.load %arg2[%c0_1, %c0_2] : memref<256x84xf32, #tpu.memory_space<vmem>>, vector<256x84xf32>
    %cst = arith.constant dense<0.000000e+00> : vector<8x84xf32>
    %2 = tpu.matmul %0, %1, %cst {dimension_numbers = #tpu.dot_dimension_numbers<[1], [0], [0], [1], [0, 0, 1, 1], [], []>} : vector<8x256xf32>, vector<256x84xf32>, vector<8x84xf32> -> vector<8x84xf32>
    %c0_3 = arith.constant 0 : index
    %c0_4 = arith.constant 0 : index
    %3 = vector.load %arg3[%c0_3, %c0_4] : memref<8x84xf32, #tpu.memory_space<vmem>>, vector<8x84xf32>
    tpu.vector_store %arg3[%c0_3, %c0_4], %2 {strides = array<i32>} : memref<8x84xf32, #tpu.memory_space<vmem>>, vector<8x84xf32>,
    return
  }
  func.func @transform_0(%arg0: i32) -> (i32, i32) {
    %c0_i32 = arith.constant 0 : i32
    %c0_i32_0 = arith.constant 0 : i32
    return %arg0, %c0_i32 : i32, i32
  }
  func.func @transform_1(%arg0: i32) -> (i32, i32) {
    %c0_i32 = arith.constant 0 : i32
    %c0_i32_0 = arith.constant 0 : i32
    %c0_i32_1 = arith.constant 0 : i32
    return %c0_i32, %c0_i32_0 : i32, i32
  }
  func.func @transform_2(%arg0: i32) -> (i32, i32) {
    %c0_i32 = arith.constant 0 : i32
    %c0_i32_0 = arith.constant 0 : i32
    return %arg0, %c0_i32 : i32, i32
  }
}

</mosaic_0001>

<llo_original>
// kernel: tpu_custom_call.1
$region0: #{tpu_custom_call.1}
  #allocation0 [shape = 'u32[]', space=smem, size = 0x4, offset = 0x4, fixed_abs, tag = 'smem constant byte address 0x4 - core index']
  #allocation1 [shape = 'u32[144,128]{1,0:T(1,128)}', space=vmem, size = 0x12000, scoped, tag = 'internal scratch']
  %s0 = inlined_call_operand.vmem [shape: f32[8,256], index: 0, kind: input, shape index: {}]
  %s1 = inlined_call_operand.vmem [shape: f32[256,84], index: 1, kind: input, shape index: {}]
  %s2 = inlined_call_operand.hbm [shape: f32[8,84], index: 2, kind: output, shape index: {}]
  %s3 = sld [smem:[#allocation0]]
  $region18: #{tpu_custom_call.1} parent=0
    _
  %s5 = ssub.s32 1, %s3
  %s6 = scalar_select 0, %s5, %s3
  $region1: #{tpu_custom_call.1} parent=0
    #allocation2 [shape = 'u8[4096]{0}', space=vmem, size = 0x1000, scoped, tag = 'output window, operand 0, single buffered']
    #allocation3 [shape = 's32[1]{0}', space=sflag, size = 0x4, scoped, tag = 'scoped memory for tpu_custom_call.1']
    %7 = vsyncpa [#allocation3], 0
    // Predicated region
    $region2: #{tpu_custom_call.1} parent=1 // pred_check
      _
    $region3: #{tpu_custom_call.1} parent=1 // pred_check_branch
      %9 = sbr.rel (0) target = $region5
    $region4: #{tpu_custom_call.1} parent=1 // pred_region
      _
    $region5: #{tpu_custom_call.1} parent=1 // pred_fallthru
      _
    // Predicated region
    $region6: #{tpu_custom_call.1} parent=1 // pred_check
      _
    $region7: #{tpu_custom_call.1} parent=1 // pred_check_branch
      %11 = sbr.rel (0) target = $region9
    $region8: #{tpu_custom_call.1} parent=1 // pred_region
      _
    $region9: #{tpu_custom_call.1} parent=1 // pred_fallthru
      _
    %v12 = vld [vmem:[%s0] sm:$0xff]
    %v13 = vld [vmem:[%s0 + $0x8] sm:$0xff]
    %v14 = vld [vmem:[%s1] sm:$0xff]
    %v15 = vld [vmem:[%s1 + $0x8] sm:$0xff]
    %v16 = vld [vmem:[%s1 + $0x10] sm:$0xff]
    %v17 = vld [vmem:[%s1 + $0x18] sm:$0xff]
    %v18 = vld [vmem:[%s1 + $0x20] sm:$0xff]
    %v19 = vld [vmem:[%s1 + $0x28] sm:$0xff]
    %v20 = vld [vmem:[%s1 + $0x30] sm:$0xff]
    %v21 = vld [vmem:[%s1 + $0x38] sm:$0xff]
    %v22 = vld [vmem:[%s1 + $0x40] sm:$0xff]
    %v23 = vld [vmem:[%s1 + $0x48] sm:$0xff]
    %v24 = vld [vmem:[%s1 + $0x50] sm:$0xff]
    %v25 = vld [vmem:[%s1 + $0x58] sm:$0xff]
    %v26 = vld [vmem:[%s1 + $0x60] sm:$0xff]
    %v27 = vld [vmem:[%s1 + $0x68] sm:$0xff]
    %v28 = vld [vmem:[%s1 + $0x70] sm:$0xff]
    %v29 = vld [vmem:[%s1 + $0x78] sm:$0xff]
    %v30 = vld [vmem:[%s1 + $0x80] sm:$0xff]
    %v31 = vld [vmem:[%s1 + $0x88] sm:$0xff]
    %v32 = vld [vmem:[%s1 + $0x90] sm:$0xff]
    %v33 = vld [vmem:[%s1 + $0x98] sm:$0xff]
    %v34 = vld [vmem:[%s1 + $0xa0] sm:$0xff]
    %v35 = vld [vmem:[%s1 + $0xa8] sm:$0xff]
    %v36 = vld [vmem:[%s1 + $0xb0] sm:$0xff]
    %v37 = vld [vmem:[%s1 + $0xb8] sm:$0xff]
    %v38 = vld [vmem:[%s1 + $0xc0] sm:$0xff]
    %v39 = vld [vmem:[%s1 + $0xc8] sm:$0xff]
    %v40 = vld [vmem:[%s1 + $0xd0] sm:$0xff]
    %v41 = vld [vmem:[%s1 + $0xd8] sm:$0xff]
    %v42 = vld [vmem:[%s1 + $0xe0] sm:$0xff]
    %v43 = vld [vmem:[%s1 + $0xe8] sm:$0xff]
    %v44 = vld [vmem:[%s1 + $0xf0] sm:$0xff]
    %v45 = vld [vmem:[%s1 + $0xf8] sm:$0xff]
    %46 = vmatprep.subr.mxu0 0.0
    %47 = vmatpush1.msra.mxu0 %v29
    %48 = vmatprep.subr.mxu0 0.0
    %49 = vmatpush1.msra.mxu0 %v28
    %50 = vmatprep.subr.mxu0 0.0
    %51 = vmatpush1.msra.mxu0 %v27
    %52 = vmatprep.subr.mxu0 0.0
    %53 = vmatpush1.msra.mxu0 %v26
    %54 = vmatprep.subr.mxu0 0.0
    %55 = vmatpush1.msra.mxu0 %v25
    %56 = vmatprep.subr.mxu0 0.0
    %57 = vmatpush1.msra.mxu0 %v24
    %58 = vmatprep.subr.mxu0 0.0
    %59 = vmatpush1.msra.mxu0 %v23
    %60 = vmatprep.subr.mxu0 0.0
    %61 = vmatpush1.msra.mxu0 %v22
    %62 = vmatprep.subr.mxu0 0.0
    %63 = vmatpush1.msra.mxu0 %v21
    %64 = vmatprep.subr.mxu0 0.0
    %65 = vmatpush1.msra.mxu0 %v20
    %66 = vmatprep.subr.mxu0 0.0
    %67 = vmatpush1.msra.mxu0 %v19
    %68 = vmatprep.subr.mxu0 0.0
    %69 = vmatpush1.msra.mxu0 %v18
    %70 = vmatprep.subr.mxu0 0.0
    %71 = vmatpush1.msra.mxu0 %v17
    %72 = vmatprep.subr.mxu0 0.0
    %73 = vmatpush1.msra.mxu0 %v16
    %74 = vmatprep.subr.mxu0 0.0
    %75 = vmatpush1.msra.mxu0 %v15
    %76 = vmatprep.subr.mxu0 0.0
    %77 = vmatpush1.msra.mxu0 %v14
    %78 = vmatprep.subr.mxu0 0.0
    %79 = vmatpush2.msra.mxu0 %v45
    %80 = vmatprep.subr.mxu0 0.0
    %81 = vmatpush2.msra.mxu0 %v44
    %82 = vmatprep.subr.mxu0 0.0
    %83 = vmatpush2.msra.mxu0 %v43
    %84 = vmatprep.subr.mxu0 0.0
    %85 = vmatpush2.msra.mxu0 %v42
    %86 = vmatprep.subr.mxu0 0.0
    %87 = vmatpush2.msra.mxu0 %v41
    %88 = vmatprep.subr.mxu0 0.0
    %89 = vmatpush2.msra.mxu0 %v40
    %90 = vmatprep.subr.mxu0 0.0
    %91 = vmatpush2.msra.mxu0 %v39
    %92 = vmatprep.subr.mxu0 0.0
    %93 = vmatpush2.msra.mxu0 %v38
    %94 = vmatprep.subr.mxu0 0.0
    %95 = vmatpush2.msra.mxu0 %v37
    %96 = vmatprep.subr.mxu0 0.0
    %97 = vmatpush2.msra.mxu0 %v36
    %98 = vmatprep.subr.mxu0 0.0
    %99 = vmatpush2.msra.mxu0 %v35
    %100 = vmatprep.subr.mxu0 0.0
    %101 = vmatpush2.msra.mxu0 %v34
    %102 = vmatprep.subr.mxu0 0.0
    %103 = vmatpush2.msra.mxu0 %v33
    %104 = vmatprep.subr.mxu0 0.0
    %105 = vmatpush2.msra.mxu0 %v32
    %106 = vmatprep.subr.mxu0 0.0
    %107 = vmatpush2.msra.mxu0 %v31
    %108 = vmatprep.subr.mxu0 0.0
    %109 = vmatpush2.msra.mxu0 %v30
    %110 = vmatprep.mubr.f32.mxu0 %v13
    %111 = vmatmul.mubr.f32.gmra.mxu0 %v12
    %v112 = vpop.f32.mrf.mxu0
    %v113 = vadd.f32 0.0, %v112
    %v114 = vpop.f32.mrf.mxu0
    %115 = vdwg.mxu0
    %vm116 = vcmask 687104
    %117 = vst.msk [vmem:[#allocation2] sm:$0xff] %vm116, %v113
    // Predicated region
    $region10: #{tpu_custom_call.1} parent=1 // pred_check
      _
    $region11: #{tpu_custom_call.1} parent=1 // pred_check_branch
      %119 = sbr.rel (0) target = $region13
    $region12: #{tpu_custom_call.1} parent=1 // pred_region
      %s121 = ssub.s32 128, 128
      %122 = vsyncadd [#allocation3], %s121
      %s124 = sshll.u32 [#allocation2], 4
      %s125 = int_to_ptr.vmem [resolvable:$true] %s124
      %127 = dma.vmem_to_hbm [thread:$0]  %s125, 128, %s2, [#allocation3]
    $region13: #{tpu_custom_call.1} parent=1 // pred_fallthru
      _
    // Predicated region
    $region14: #{tpu_custom_call.1} parent=1 // pred_check
      _
    $region15: #{tpu_custom_call.1} parent=1 // pred_check_branch
      %129 = sbr.rel (0) target = $region17
    $region16: #{tpu_custom_call.1} parent=1 // pred_region
      %130 = dma.done [#allocation3], 128
    $region17: #{tpu_custom_call.1} parent=1 // pred_fallthru
      _
    %131 = vsyncpa [#allocation3], 1

</llo_original>
